<compile_context>
chip_gen: v5e
topology: v5e:2x2
jax: 0.10.0
libtpu: 0.0.40
codegen_flags: <defaults>
</compile_context>

<pallas_src>
import jax
import jax.numpy as jnp
import numpy as np
from jax.experimental import pallas as pl
from jax.experimental.pallas import tpu as pltpu

KERNEL = 4
STRIDE = 2
PADDING = 1
EPS = 1e-5
LANES = 128


def _round_up(v, m):
    return (v + m - 1) // m * m


# ---------------- Pass 1: tiled matmul + per-tile channel stats ----------------
def _matmul_stats_kernel(p_ref, w_ref, y_ref, s_ref):
    # (TM, K4) bf16 @ (K4, Cpad) bf16 -> f32 accumulation on the MXU.
    y = jnp.dot(p_ref[...], w_ref[...], preferred_element_type=jnp.float32)
    y_ref[...] = y
    # Per-channel partial sums for BatchNorm batch statistics (XLU reductions,
    # off the MXU critical path). Row 0 = sum, row 1 = sum of squares.
    s_ref[...] = jnp.zeros(s_ref.shape, jnp.float32)
    s_ref[0:1, :] = jnp.sum(y, axis=0, keepdims=True)
    s_ref[1:2, :] = jnp.sum(y * y, axis=0, keepdims=True)


# ---------------- Pass 2: normalize (one FMA per element) + ReLU ----------------
def _norm_relu_kernel(y_ref, sc_ref, sh_ref, o_ref):
    o_ref[...] = jnp.maximum(y_ref[...] * sc_ref[...] + sh_ref[...], 0.0)


def deconv_block_forward(x, weight, bias, gamma, beta):
    """ConvTranspose2d(4, 2, 1, bias=True) + BatchNorm2d (batch stats) + ReLU.

    x:      (N, Cin, H, W)     float32 NCHW
    weight: (Cin, Cout, 4, 4)  float32 (PyTorch ConvTranspose2d layout)
    bias, gamma, beta: (Cout,)
    returns (N, Cout, 2H, 2W)  float32 NCHW
    """
    # The conv bias is a per-channel constant, exactly cancelled by BatchNorm's
    # (training-mode) mean subtraction -> dead work, dropped.
    del bias
    N, Cin, H, W = x.shape
    Cout = weight.shape[1]
    M = N * H * W
    K4 = 4 * Cin
    Cpad = _round_up(Cout, LANES)

    # Tile size: 256 rows is safe across v5e/v6e/v7x at these K/Cout; bump
    # toward 512-1024 on v6e (128 MiB VMEM) / keep <=512 on v7x (64 MiB).
    TM = min(256, _round_up(M, 8))
    M_pad = _round_up(M, TM)
    n_mt = M_pad // TM

    # ---- sub-pixel (parity) decomposition: 4 independent 2x2 convs ----
    # Output pixel (2i+r, 2j+c) only touches x[i-1+dh, j-1+dw], dh,dw in {0,1},
    # with weight taps kh = 3-r-2*dh, kw = 3-c-2*dw (spatial flip built in).
    xh = jnp.transpose(x, (0, 2, 3, 1)).astype(jnp.bfloat16)      # (N, H, W, Cin)
    xp = jnp.pad(xh, ((0, 0), (1, 1), (1, 1), (0, 0)))            # (N, H+2, W+2, Cin)

    pats, wmats = [], []
    for r in range(2):
        for c in range(2):
            taps = [xp[:, r + dh:r + dh + H, c + dw:c + dw + W, :]
                    for dh in range(2) for dw in range(2)]
            pats.append(jnp.stack(taps, axis=3).reshape(M, K4))   # (M, 4*Cin)
            wt = [weight[:, :, 3 - r - 2 * dh, 3 - c - 2 * dw]
                  for dh in range(2) for dw in range(2)]          # 4 x (Cin, Cout)
            wmats.append(jnp.stack(wt, axis=0).reshape(K4, Cout))
    patches = jnp.stack(pats, axis=0)                             # (4, M, K4) bf16
    if M_pad > M:
        patches = jnp.pad(patches, ((0, 0), (0, M_pad - M), (0, 0)))
    w_all = jnp.stack(wmats, axis=0)                              # (4, K4, Cout)
    w_all = jnp.pad(w_all, ((0, 0), (0, 0), (0, Cpad - Cout))).astype(jnp.bfloat16)
    # TODO(synk): for very large Cin/M, read x directly from the kernel via
    # manual DMA / Element index_map instead of materializing patches in HBM.

    grid = (4, n_mt)
    cparams = pltpu.CompilerParams(dimension_semantics=("parallel", "parallel"))

    # -------- pass 1: conv-as-matmul + partial BN stats --------
    y_flat, stats = pl.pallas_call(
        _matmul_stats_kernel,
        out_shape=(
            jax.ShapeDtypeStruct((4, M_pad, Cpad), jnp.float32),
            jax.ShapeDtypeStruct((4, n_mt, 8, Cpad), jnp.float32),
        ),
        grid=grid,
        in_specs=[
            pl.BlockSpec((None, TM, K4), lambda p, m: (p, m, 0)),
            pl.BlockSpec((None, K4, Cpad), lambda p, m: (p, 0, 0)),
        ],
        out_specs=(
            pl.BlockSpec((None, TM, Cpad), lambda p, m: (p, m, 0)),
            pl.BlockSpec((None, None, 8, Cpad), lambda p, m: (p, m, 0, 0)),
        ),
        compiler_params=cparams,
    )(patches, w_all)

    # ---- tiny cross-tile reduction + BN affine folding (Cout-sized, plain JAX) ----
    count = jnp.float32(4 * M)                 # N*OH*OW elements per channel
    tot = jnp.sum(stats, axis=(0, 1))          # (8, Cpad); rows 0/1 = sum / sumsq
    mean = tot[0] / count
    var = jnp.maximum(tot[1] / count - mean * mean, 0.0)   # biased (training mode)
    gamma_p = jnp.pad(gamma, (0, Cpad - Cout))
    beta_p = jnp.pad(beta, (0, Cpad - Cout))
    scale_v = gamma_p * jax.lax.rsqrt(var + EPS)
    shift_v = beta_p - mean * scale_v
    scale = scale_v.reshape(1, Cpad)
    shift = shift_v.reshape(1, Cpad)

    # -------- pass 2: scale/shift + ReLU, lane-dense --------
    out_flat = pl.pallas_call(
        _norm_relu_kernel,
        out_shape=jax.ShapeDtypeStruct((4, M_pad, Cpad), jnp.float32),
        grid=grid,
        in_specs=[
            pl.BlockSpec((None, TM, Cpad), lambda p, m: (p, m, 0)),
            pl.BlockSpec((1, Cpad), lambda p, m: (0, 0)),
            pl.BlockSpec((1, Cpad), lambda p, m: (0, 0)),
        ],
        out_specs=pl.BlockSpec((None, TM, Cpad), lambda p, m: (p, m, 0)),
        compiler_params=cparams,
    )(y_flat, scale, shift)

    # (parity, M, Cpad) -> NCHW (N, Cout, 2H, 2W). Done outside the kernel only
    # because PyTorch semantics require NCHW; NHWC consumers could take out_flat.
    out = out_flat[:, :M, :Cout].reshape(2, 2, N, H, W, Cout)
    return out.transpose(2, 5, 3, 0, 4, 1).reshape(N, Cout, 2 * H, 2 * W)


def _reference(x, weight, bias, gamma, beta):
    # Pure-JAX f32 reference (ConvTranspose as dilated conv + BN(batch) + ReLU).
    k, s, p = KERNEL, STRIDE, PADDING
    w_conv = jnp.transpose(weight[:, :, ::-1, ::-1], (1, 0, 2, 3))  # (Cout,Cin,k,k)
    y = jax.lax.conv_general_dilated(
        x, w_conv, window_strides=(1, 1),
        padding=[(k - 1 - p, k - 1 - p)] * 2,
        lhs_dilation=(s, s),
        dimension_numbers=("NCHW", "OIHW", "NCHW"),
        precision=jax.lax.Precision.HIGHEST)
    y = y + bias[None, :, None, None]
    mean = y.mean(axis=(0, 2, 3), keepdims=True)
    var = ((y - mean) ** 2).mean(axis=(0, 2, 3), keepdims=True)
    y_hat = (y - mean) / jnp.sqrt(var + EPS)
    out = gamma[None, :, None, None] * y_hat + beta[None, :, None, None]
    return jnp.maximum(out, 0.0)


if __name__ == "__main__":
    key = jax.random.PRNGKey(0)
    kx, kw, kb = jax.random.split(key, 3)

    N, Cin, Cout, H, W = 2, 4, 8, 16, 16
    x = jax.random.normal(kx, (N, Cin, H, W), jnp.float32)
    weight = jax.random.normal(kw, (Cin, Cout, KERNEL, KERNEL), jnp.float32) * 0.1
    bias = jax.random.normal(kb, (Cout,), jnp.float32) * 0.1
    gamma = jnp.ones((Cout,), jnp.float32)   # PyTorch BatchNorm2d default init
    beta = jnp.zeros((Cout,), jnp.float32)

    fwd = jax.jit(deconv_block_forward)
    out = jax.block_until_ready(fwd(x, weight, bias, gamma, beta))

    OH = (H - 1) * STRIDE - 2 * PADDING + KERNEL
    assert out.shape == (N, Cout, OH, OH), out.shape

    ref = _reference(x, weight, bias, gamma, beta)
    # bf16 MXU operands (f32 accumulation) vs. the f32 HIGHEST-precision reference.
    np.testing.assert_allclose(np.asarray(out), np.asarray(ref),
                               rtol=5e-2, atol=5e-2)
    print("KERNEL_OK")
</pallas_src>

<mosaic_0001>
module attributes {stable_mosaic.version = 11 : i64} {
  func.func @_matmul_stats_kernel(%arg0: i32, %arg1: i32, %arg2: memref<1x256x16xbf16, #tpu.memory_space<vmem>>, %arg3: memref<1x16x128xbf16, #tpu.memory_space<vmem>>, %arg4: memref<1x256x128xf32, #tpu.memory_space<vmem>>, %arg5: memref<1x1x8x128xf32, #tpu.memory_space<vmem>>) attributes {dimension_semantics = [#tpu.dimension_semantics<parallel>, #tpu.dimension_semantics<parallel>], iteration_bounds = array<i64: 4, 2>, scalar_prefetch = 0 : i64, scratch_operands = 0 : i64, tpu.core_type = #tpu.core_type<tc>, window_params = [{transform_indices = @transform_0, window_bounds = array<i64: 1, 256, 16>}, {transform_indices = @transform_1, window_bounds = array<i64: 1, 16, 128>}, {transform_indices = @transform_2, window_bounds = array<i64: 1, 256, 128>}, {transform_indices = @transform_3, window_bounds = array<i64: 1, 1, 8, 128>}]} {
    %c0 = arith.constant 0 : index
    %c0_0 = arith.constant 0 : index
    %c0_1 = arith.constant 0 : index
    %0 = vector.load %arg2[%c0, %c0_0, %c0_1] : memref<1x256x16xbf16, #tpu.memory_space<vmem>>, vector<1x256x16xbf16>
    %1 = vector.shape_cast %0 : vector<1x256x16xbf16> to vector<256x16xbf16>
    %c0_2 = arith.constant 0 : index
    %c0_3 = arith.constant 0 : index
    %c0_4 = arith.constant 0 : index
    %2 = vector.load %arg3[%c0_2, %c0_3, %c0_4] : memref<1x16x128xbf16, #tpu.memory_space<vmem>>, vector<1x16x128xbf16>
    %3 = vector.shape_cast %2 : vector<1x16x128xbf16> to vector<16x128xbf16>
    %cst = arith.constant dense<0.000000e+00> : vector<256x128xf32>
    %4 = tpu.matmul %1, %3, %cst {dimension_numbers = #tpu.dot_dimension_numbers<[1], [0], [0], [1], [0, 0, 1, 1], [], []>} : vector<256x16xbf16>, vector<16x128xbf16>, vector<256x128xf32> -> vector<256x128xf32>
    %c0_5 = arith.constant 0 : index
    %c0_6 = arith.constant 0 : index
    %c0_7 = arith.constant 0 : index
    %5 = vector.load %arg4[%c0_5, %c0_6, %c0_7] : memref<1x256x128xf32, #tpu.memory_space<vmem>>, vector<1x256x128xf32>
    %6 = vector.shape_cast %5 : vector<1x256x128xf32> to vector<256x128xf32>
    %7 = vector.shape_cast %4 : vector<256x128xf32> to vector<1x256x128xf32>
    tpu.vector_store %arg4[%c0_5, %c0_6, %c0_7], %7 {strides = array<i32>} : memref<1x256x128xf32, #tpu.memory_space<vmem>>, vector<1x256x128xf32>,
    %cst_8 = arith.constant 0.000000e+00 : f32
    %8 = vector.broadcast %cst_8 : f32 to vector<8x128xf32>
    %c0_9 = arith.constant 0 : index
    %c0_10 = arith.constant 0 : index
    %c0_11 = arith.constant 0 : index
    %c0_12 = arith.constant 0 : index
    %9 = vector.load %arg5[%c0_9, %c0_10, %c0_11, %c0_12] : memref<1x1x8x128xf32, #tpu.memory_space<vmem>>, vector<1x1x8x128xf32>
    %10 = vector.shape_cast %9 : vector<1x1x8x128xf32> to vector<8x128xf32>
    %11 = vector.shape_cast %8 : vector<8x128xf32> to vector<1x1x8x128xf32>
    tpu.vector_store %arg5[%c0_9, %c0_10, %c0_11, %c0_12], %11 {strides = array<i32>} : memref<1x1x8x128xf32, #tpu.memory_space<vmem>>, vector<1x1x8x128xf32>,
    %cst_13 = arith.constant dense<0.000000e+00> : vector<128xf32>
    %12 = vector.multi_reduction <add>, %4, %cst_13 [0] : vector<256x128xf32> to vector<128xf32>
    %13 = vector.shape_cast %12 : vector<128xf32> to vector<1x128xf32>
    %c0_14 = arith.constant 0 : index
    %c0_15 = arith.constant 0 : index
    %c0_16 = arith.constant 0 : index
    %c0_17 = arith.constant 0 : index
    %14 = vector.load %arg5[%c0_14, %c0_15, %c0_16, %c0_17] : memref<1x1x8x128xf32, #tpu.memory_space<vmem>>, vector<1x1x1x128xf32>
    %15 = vector.shape_cast %14 : vector<1x1x1x128xf32> to vector<1x128xf32>
    %16 = vector.shape_cast %13 : vector<1x128xf32> to vector<1x1x1x128xf32>
    tpu.vector_store %arg5[%c0_14, %c0_15, %c0_16, %c0_17], %16 {strides = array<i32>} : memref<1x1x8x128xf32, #tpu.memory_space<vmem>>, vector<1x1x1x128xf32>,
    %17 = arith.mulf %4, %4 : vector<256x128xf32>
    %cst_18 = arith.constant dense<0.000000e+00> : vector<128xf32>
    %18 = vector.multi_reduction <add>, %17, %cst_18 [0] : vector<256x128xf32> to vector<128xf32>
    %19 = vector.shape_cast %18 : vector<128xf32> to vector<1x128xf32>
    %c0_19 = arith.constant 0 : index
    %c0_20 = arith.constant 0 : index
    %c1 = arith.constant 1 : index
    %c0_21 = arith.constant 0 : index
    %20 = vector.load %arg5[%c0_19, %c0_20, %c1, %c0_21] : memref<1x1x8x128xf32, #tpu.memory_space<vmem>>, vector<1x1x1x128xf32>
    %21 = vector.shape_cast %20 : vector<1x1x1x128xf32> to vector<1x128xf32>
    %22 = vector.shape_cast %19 : vector<1x128xf32> to vector<1x1x1x128xf32>
    tpu.vector_store %arg5[%c0_19, %c0_20, %c1, %c0_21], %22 {strides = array<i32>} : memref<1x1x8x128xf32, #tpu.memory_space<vmem>>, vector<1x1x1x128xf32>,
    return
  }
  func.func @transform_0(%arg0: i32, %arg1: i32) -> (i32, i32, i32) {
    %c0_i32 = arith.constant 0 : i32
    %c0_i32_0 = arith.constant 0 : i32
    return %arg0, %arg1, %c0_i32 : i32, i32, i32
  }
  func.func @transform_1(%arg0: i32, %arg1: i32) -> (i32, i32, i32) {
    %c0_i32 = arith.constant 0 : i32
    %c0_i32_0 = arith.constant 0 : i32
    %c0_i32_1 = arith.constant 0 : i32
    return %arg0, %c0_i32, %c0_i32_0 : i32, i32, i32
  }
  func.func @transform_2(%arg0: i32, %arg1: i32) -> (i32, i32, i32) {
    %c0_i32 = arith.constant 0 : i32
    %c0_i32_0 = arith.constant 0 : i32
    return %arg0, %arg1, %c0_i32 : i32, i32, i32
  }
  func.func @transform_3(%arg0: i32, %arg1: i32) -> (i32, i32, i32, i32) {
    %c0_i32 = arith.constant 0 : i32
    %c0_i32_0 = arith.constant 0 : i32
    %c0_i32_1 = arith.constant 0 : i32
    return %arg0, %arg1, %c0_i32, %c0_i32_0 : i32, i32, i32, i32
  }
}

module attributes {stable_mosaic.version = 11 : i64} {
  func.func @_norm_relu_kernel(%arg0: i32, %arg1: i32, %arg2: memref<1x256x128xf32, #tpu.memory_space<vmem>>, %arg3: memref<1x128xf32, #tpu.memory_space<vmem>>, %arg4: memref<1x128xf32, #tpu.memory_space<vmem>>, %arg5: memref<1x256x128xf32, #tpu.memory_space<vmem>>) attributes {dimension_semantics = [#tpu.dimension_semantics<parallel>, #tpu.dimension_semantics<parallel>], iteration_bounds = array<i64: 4, 2>, scalar_prefetch = 0 : i64, scratch_operands = 0 : i64, tpu.core_type = #tpu.core_type<tc>, window_params = [{transform_indices = @transform_0, window_bounds = array<i64: 1, 256, 128>}, {pipeline_mode = #tpu.pipeline_mode<synchronous>, transform_indices = @transform_1, window_bounds = array<i64: 1, 128>}, {pipeline_mode = #tpu.pipeline_mode<synchronous>, transform_indices = @transform_2, window_bounds = array<i64: 1, 128>}, {transform_indices = @transform_3, window_bounds = array<i64: 1, 256, 128>}]} {
    %c0 = arith.constant 0 : index
    %c0_0 = arith.constant 0 : index
    %c0_1 = arith.constant 0 : index
    %0 = vector.load %arg2[%c0, %c0_0, %c0_1] : memref<1x256x128xf32, #tpu.memory_space<vmem>>, vector<1x256x128xf32>
    %1 = vector.shape_cast %0 : vector<1x256x128xf32> to vector<256x128xf32>
    %c0_2 = arith.constant 0 : index
    %c0_3 = arith.constant 0 : index
    %2 = vector.load %arg3[%c0_2, %c0_3] : memref<1x128xf32, #tpu.memory_space<vmem>>, vector<1x128xf32>
    %3 = vector.broadcast %2 : vector<1x128xf32> to vector<256x128xf32>
    %4 = arith.mulf %1, %3 : vector<256x128xf32>
    %c0_4 = arith.constant 0 : index
    %c0_5 = arith.constant 0 : index
    %5 = vector.load %arg4[%c0_4, %c0_5] : memref<1x128xf32, #tpu.memory_space<vmem>>, vector<1x128xf32>
    %6 = vector.broadcast %5 : vector<1x128xf32> to vector<256x128xf32>
    %7 = arith.addf %4, %6 : vector<256x128xf32>
    %cst = arith.constant 0.000000e+00 : f32
    %8 = vector.broadcast %cst : f32 to vector<256x128xf32>
    %9 = arith.maximumf %7, %8 : vector<256x128xf32>
    %c0_6 = arith.constant 0 : index
    %c0_7 = arith.constant 0 : index
    %c0_8 = arith.constant 0 : index
    %10 = vector.load %arg5[%c0_6, %c0_7, %c0_8] : memref<1x256x128xf32, #tpu.memory_space<vmem>>, vector<1x256x128xf32>
    %11 = vector.shape_cast %10 : vector<1x256x128xf32> to vector<256x128xf32>
    %12 = vector.shape_cast %9 : vector<256x128xf32> to vector<1x256x128xf32>
    tpu.vector_store %arg5[%c0_6, %c0_7, %c0_8], %12 {strides = array<i32>} : memref<1x256x128xf32, #tpu.memory_space<vmem>>, vector<1x256x128xf32>,
    return
  }
  func.func @transform_0(%arg0: i32, %arg1: i32) -> (i32, i32, i32) {
    %c0_i32 = arith.constant 0 : i32
    %c0_i32_0 = arith.constant 0 : i32
    return %arg0, %arg1, %c0_i32 : i32, i32, i32
  }
  func.func @transform_1(%arg0: i32, %arg1: i32) -> (i32, i32) {
    %c0_i32 = arith.constant 0 : i32
    %c0_i32_0 = arith.constant 0 : i32
    %c0_i32_1 = arith.constant 0 : i32
    return %c0_i32, %c0_i32_0 : i32, i32
  }
  func.func @transform_2(%arg0: i32, %arg1: i32) -> (i32, i32) {
    %c0_i32 = arith.constant 0 : i32
    %c0_i32_0 = arith.constant 0 : i32
    %c0_i32_1 = arith.constant 0 : i32
    return %c0_i32, %c0_i32_0 : i32, i32
  }
  func.func @transform_3(%arg0: i32, %arg1: i32) -> (i32, i32, i32) {
    %c0_i32 = arith.constant 0 : i32
    %c0_i32_0 = arith.constant 0 : i32
    return %arg0, %arg1, %c0_i32 : i32, i32, i32
  }
}

</mosaic_0001>

<llo_original>
// kernel: deconv_block_forward.3
$region0: #{deconv_block_forward.3}
  #allocation0 [shape = 'u32[]', space=smem, size = 0x4, offset = 0x4, fixed_abs, tag = 'smem constant byte address 0x4 - core index']
  #allocation1 [shape = 'u32[72,128]{1,0:T(1,128)}', space=vmem, size = 0x9000, scoped, tag = 'internal scratch']
  %s0 = inlined_call_operand.vmem [shape: f32[4,512,128], index: 0, kind: input, shape index: {}]
  %s1 = inlined_call_operand.vmem [shape: f32[1,128], index: 1, kind: input, shape index: {}]
  %s2 = inlined_call_operand.vmem [shape: f32[1,128], index: 2, kind: input, shape index: {}]
  %s3 = inlined_call_operand.vmem [shape: f32[4,512,128], index: 3, kind: output, shape index: {}]
  %s4 = sld [smem:[#allocation0]]
  $region45: #{deconv_block_forward.3} parent=0
    _
  %s6 = ssub.s32 1, %s4
  %s7 = scalar_select 0, %s6, %s4
  loop: start=0, step=1, limit=10
  $region2: #{deconv_block_forward.3} parent=0 // loop_pre_header
    _
  $region3: #{deconv_block_forward.3} parent=0 // loop_header
    %s9 = sphi 0, %s13
    %p10 = scmp.ge.s32.totalorder %s9, 10
    %s16 = sphi 0, %s28
    %s17 = sphi 0, %s24
    %s18 = sphi 0, %s16
    %s19 = sphi 0, %s17
    %s20 = sphi 0, %s18
    %s21 = sphi 0, %s19
    %s33 = sphi 0, %s35
    %s36 = sphi 0, %s33
    %s37 = sphi 0, %s36
    %s53 = sphi 0, %s37
    %s57 = sphi 0, %s57
    %s59 = sphi 0, %s57
    %s60 = sphi 0, %s59
    %s74 = sphi 0, %s60
    %s78 = sphi 0, %s78
    %s80 = sphi 0, %s78
    %s81 = sphi 0, %s80
    %s95 = sphi 0, %s81
    %s103 = sphi 0, %s105
    %s106 = sphi 0, %s103
    %s107 = sphi 0, %s106
    %s123 = sphi 0, %s107
  $region4: #{deconv_block_forward.3} parent=0 // loop_header_branch
    %12 = sbr.rel (%p10) target = $region8
  $region5: #{deconv_block_forward.3} parent=0 // loop_body
    %s14 = ssub.s32 %s9, 1
    %s15 = ssub.s32 %s9, 2
    %s22 = sadd.s32 1, %s17
    %p23 = scmp.ge.s32.totalorder %s22, 2
    %s24 = scalar_select %p23, 0, %s22
    %s25 = sadd.s32 1, %s16
    %s26 = scalar_select %p23, %s25, %s16
    %p27 = scmp.ge.s32.totalorder %s26, 4
    %s28 = scalar_select %p27, 0, %s26
    %s29 = ssub.s32 %s16, %s28
    %s30 = ssub.s32 %s17, %s24
    %s31 = sor.u32 %s29, %s30
    %p32 = scmp.eq.s32.totalorder %s31, 0
    %s34 = sadd.s32 %s33, 1
    %s35 = scalar_select %p32, %s33, %s34
    %p38 = pneg %p32
    %p39 = scmp.eq.s32.totalorder %s9, 7
    %p40 = por %p38, %p39
    %p41 = scmp.ne.s32.totalorder %s33, %s36
    %p42 = scmp.eq.s32.totalorder %s9, 0
    %p43 = por %p41, %p42
    %p44 = scmp.ne.s32.totalorder %s33, %s36
    %p45 = scmp.eq.s32.totalorder %s14, 7
    %p46 = por %p44, %p45
    %p47 = scmp.ne.s32.totalorder %s36, %s37
    %p48 = scmp.eq.s32.totalorder %s14, 0
    %p49 = por %p47, %p48
    %p50 = scmp.ne.s32.totalorder %s36, %s37
    %p51 = scmp.eq.s32.totalorder %s15, 7
    %p52 = por %p50, %p51
    %p54 = scmp.ne.s32.totalorder %s37, %s53
    %p55 = scmp.eq.s32.totalorder %s15, 0
    %p56 = por %p54, %p55
    %s58 = sadd.s32 %s57, 1
    %p61 = scmp.eq.s32.totalorder %s9, 7
    %p62 = scmp.ne.s32.totalorder %s57, %s59
    %p63 = scmp.eq.s32.totalorder %s9, 0
    %p64 = por %p62, %p63
    %p65 = scmp.ne.s32.totalorder %s57, %s59
    %p66 = scmp.eq.s32.totalorder %s14, 7
    %p67 = por %p65, %p66
    %p68 = scmp.ne.s32.totalorder %s59, %s60
    %p69 = scmp.eq.s32.totalorder %s14, 0
    %p70 = por %p68, %p69
    %p71 = scmp.ne.s32.totalorder %s59, %s60
    %p72 = scmp.eq.s32.totalorder %s15, 7
    %p73 = por %p71, %p72
    %p75 = scmp.ne.s32.totalorder %s60, %s74
    %p76 = scmp.eq.s32.totalorder %s15, 0
    %p77 = por %p75, %p76
    %s79 = sadd.s32 %s78, 1
    %p82 = scmp.eq.s32.totalorder %s9, 7
    %p83 = scmp.ne.s32.totalorder %s78, %s80
    %p84 = scmp.eq.s32.totalorder %s9, 0
    %p85 = por %p83, %p84
    %p86 = scmp.ne.s32.totalorder %s78, %s80
    %p87 = scmp.eq.s32.totalorder %s14, 7
    %p88 = por %p86, %p87
    %p89 = scmp.ne.s32.totalorder %s80, %s81
    %p90 = scmp.eq.s32.totalorder %s14, 0
    %p91 = por %p89, %p90
    %p92 = scmp.ne.s32.totalorder %s80, %s81
    %p93 = scmp.eq.s32.totalorder %s15, 7
    %p94 = por %p92, %p93
    %p96 = scmp.ne.s32.totalorder %s81, %s95
    %p97 = scmp.eq.s32.totalorder %s15, 0
    %p98 = por %p96, %p97
    %s99 = ssub.s32 %s16, %s28
    %s100 = ssub.s32 %s17, %s24
    %s101 = sor.u32 %s99, %s100
    %p102 = scmp.eq.s32.totalorder %s101, 0
    %s104 = sadd.s32 %s103, 1
    %s105 = scalar_select %p102, %s103, %s104
    %p108 = pneg %p102
    %p109 = scmp.eq.s32.totalorder %s9, 7
    %p110 = por %p108, %p109
    %p111 = scmp.ne.s32.totalorder %s103, %s106
    %p112 = scmp.eq.s32.totalorder %s9, 0
    %p113 = por %p111, %p112
    %p114 = scmp.ne.s32.totalorder %s103, %s106
    %p115 = scmp.eq.s32.totalorder %s14, 7
    %p116 = por %p114, %p115
    %p117 = scmp.ne.s32.totalorder %s106, %s107
    %p118 = scmp.eq.s32.totalorder %s14, 0
    %p119 = por %p117, %p118
    %p120 = scmp.ne.s32.totalorder %s106, %s107
    %p121 = scmp.eq.s32.totalorder %s15, 7
    %p122 = por %p120, %p121
    %p124 = scmp.ne.s32.totalorder %s107, %s123
    %p125 = scmp.eq.s32.totalorder %s15, 0
    %p126 = por %p124, %p125
    %p127 = scmp.le.s32.totalorder 1, %s9
    %p128 = scmp.lt.s32.totalorder %s9, 9
    %p129 = pnand %p127, %p128
    %p130 = pneg %p129
    // Predicated region
    $region9: #{deconv_block_forward.3} parent=5 // pred_check
      _
    $region10: #{deconv_block_forward.3} parent=5 // pred_check_branch
      %132 = sbr.rel (%p129) target = $region12
    $region11: #{deconv_block_forward.3} parent=5 // pred_region
      %s133 = ssub.s32 %s9, 1
      // Predicated region
      $region13: #{deconv_block_forward.3} parent=11 // pred_check
        %p134 = pneg %p70
      $region14: #{deconv_block_forward.3} parent=11 // pred_check_branch
        %136 = sbr.rel (%p134) target = $region16
      $region15: #{deconv_block_forward.3} parent=11 // pred_region
        _
      $region16: #{deconv_block_forward.3} parent=11 // pred_fallthru
        _
      // Predicated region
      $region17: #{deconv_block_forward.3} parent=11 // pred_check
        %p137 = pneg %p91
      $region18: #{deconv_block_forward.3} parent=11 // pred_check_branch
        %139 = sbr.rel (%p137) target = $region20
      $region19: #{deconv_block_forward.3} parent=11 // pred_region
        _
      $region20: #{deconv_block_forward.3} parent=11 // pred_fallthru
        _
    $region12: #{deconv_block_forward.3} parent=5 // pred_fallthru
      _
    %p140 = scmp.lt.s32.totalorder %s9, 8
    // Predicated region
    $region21: #{deconv_block_forward.3} parent=5 // pred_check
      %p141 = pneg %p140
    $region22: #{deconv_block_forward.3} parent=5 // pred_check_branch
      %143 = sbr.rel (%p141) target = $region24
    $region23: #{deconv_block_forward.3} parent=5 // pred_region
      // Predicated region
      $region25: #{deconv_block_forward.3} parent=23 // pred_check
        %p144 = pneg %p43
      $region26: #{deconv_block_forward.3} parent=23 // pred_check_branch
        %146 = sbr.rel (%p144) target = $region28
      $region27: #{deconv_block_forward.3} parent=23 // pred_region
        %s147 = smul.u32 32, %s17
        %p148 = scmp.lt.s32.totalorder %s16, 3
        %s149 = scalar_select %p148, %s16, 3
        %p150 = scmp.lt.s32.totalorder %s147, 63
        %s151 = scalar_select %p150, %s147, 63
        %s152 = smul.addr %s149, 64
        %s153 = sadd.s32 %s151, %s152
        %s154 = smul.addr %s153, 8
        %s155 = scalar_lea.vmem %s0, %s154
        %s156 = smul.u32 32, %s17
      $region28: #{deconv_block_forward.3} parent=23 // pred_fallthru
        _
    $region24: #{deconv_block_forward.3} parent=5 // pred_fallthru
      _
    %p157 = scmp.le.s32.totalorder 1, %s9
    %p158 = scmp.lt.s32.totalorder %s9, 9
    %p159 = pnand %p157, %p158
    %p160 = pneg %p159
    // Predicated region
    $region29: #{deconv_block_forward.3} parent=5 // pred_check
      _
    $region30: #{deconv_block_forward.3} parent=5 // pred_check_branch
      %162 = sbr.rel (%p159) target = $region32
    $region31: #{deconv_block_forward.3} parent=5 // pred_region
      %s163 = ssub.s32 %s9, 1
      %s164 = smul.u32 32, %s19
      %p165 = scmp.lt.s32.totalorder %s18, 3
      %s166 = scalar_select %p165, %s18, 3
      %p167 = scmp.lt.s32.totalorder %s164, 63
      %s168 = scalar_select %p167, %s164, 63
      %s169 = smul.addr %s166, 64
      %s170 = sadd.s32 %s168, %s169
      %s171 = smul.addr %s170, 8
      %s172 = scalar_lea.vmem %s0, %s171
      %p173 = pneg %p49
      %p174 = pneg %p46
      %p175 = pneg %p70
      %p176 = pneg %p67
      %p177 = pneg %p91
      %p178 = pneg %p88
      %p179 = pneg %p119
      %p180 = pneg %p116
      %s181 = smul.u32 32, %s19
      %p182 = scmp.lt.s32.totalorder %s18, 3
      %s183 = scalar_select %p182, %s18, 3
      %p184 = scmp.lt.s32.totalorder %s181, 63
      %s185 = scalar_select %p184, %s181, 63
      %s186 = smul.addr %s183, 64
      %s187 = sadd.s32 %s185, %s186
      %s188 = smul.addr %s187, 8
      %s189 = scalar_lea.vmem %s3, %s188
      %s190 = smul.u32 32, %s19
      %p191 = scmp.lt.s32.totalorder %s18, 3
      %s192 = scalar_select %p191, %s18, 3
      %p193 = scmp.lt.s32.totalorder %s190, 63
      %s194 = scalar_select %p193, %s190, 63
      %s195 = smul.addr %s192, 64
      %s196 = sadd.s32 %s194, %s195
      %s197 = smul.addr %s196, 8
      %s198 = scalar_lea.vmem %s0, %s197
      %s199 = smul.u32 32, %s19
      %s200 = smul.u32 32, %s19
      %p201 = scmp.lt.s32.totalorder %s18, 3
      %s202 = scalar_select %p201, %s18, 3
      %p203 = scmp.lt.s32.totalorder %s200, 63
      %s204 = scalar_select %p203, %s200, 63
      %s205 = smul.addr %s202, 64
      %s206 = sadd.s32 %s204, %s205
      %s207 = smul.addr %s206, 8
      %s208 = scalar_lea.vmem %s3, %s207
      %s209 = smul.u32 32, %s19
      %v210 = vld [vmem:[%s198] sm:$0xff]
      %v211 = vld [vmem:[%s198 + $0x8] sm:$0xff]
      %v212 = vld [vmem:[%s198 + $0x10] sm:$0xff]
      %v213 = vld [vmem:[%s198 + $0x18] sm:$0xff]
      %v214 = vld [vmem:[%s198 + $0x20] sm:$0xff]
      %v215 = vld [vmem:[%s198 + $0x28] sm:$0xff]
      %v216 = vld [vmem:[%s198 + $0x30] sm:$0xff]
      %v217 = vld [vmem:[%s198 + $0x38] sm:$0xff]
      %v218 = vld [vmem:[%s198 + $0x40] sm:$0xff]
      %v219 = vld [vmem:[%s198 + $0x48] sm:$0xff]
      %v220 = vld [vmem:[%s198 + $0x50] sm:$0xff]
      %v221 = vld [vmem:[%s198 + $0x58] sm:$0xff]
      %v222 = vld [vmem:[%s198 + $0x60] sm:$0xff]
      %v223 = vld [vmem:[%s198 + $0x68] sm:$0xff]
      %v224 = vld [vmem:[%s198 + $0x70] sm:$0xff]
      %v225 = vld [vmem:[%s198 + $0x78] sm:$0xff]
      %v226 = vld [vmem:[%s198 + $0x80] sm:$0xff]
      %v227 = vld [vmem:[%s198 + $0x88] sm:$0xff]
      %v228 = vld [vmem:[%s198 + $0x90] sm:$0xff]
      %v229 = vld [vmem:[%s198 + $0x98] sm:$0xff]
      %v230 = vld [vmem:[%s198 + $0xa0] sm:$0xff]
      %v231 = vld [vmem:[%s198 + $0xa8] sm:$0xff]
      %v232 = vld [vmem:[%s198 + $0xb0] sm:$0xff]
      %v233 = vld [vmem:[%s198 + $0xb8] sm:$0xff]
      %v234 = vld [vmem:[%s198 + $0xc0] sm:$0xff]
      %v235 = vld [vmem:[%s198 + $0xc8] sm:$0xff]
      %v236 = vld [vmem:[%s198 + $0xd0] sm:$0xff]
      %v237 = vld [vmem:[%s198 + $0xd8] sm:$0xff]
      %v238 = vld [vmem:[%s198 + $0xe0] sm:$0xff]
      %v239 = vld [vmem:[%s198 + $0xe8] sm:$0xff]
      %v240 = vld [vmem:[%s198 + $0xf0] sm:$0xff]
      %v241 = vld [vmem:[%s198 + $0xf8] sm:$0xff]
      %v242 = vld [vmem:[%s1] sm:$0x1]
      %v244 = vperm.slane %v242, 0
      %v246 = vmul.f32 %v210, %v244
      %v247 = vmul.f32 %v211, %v244
      %v248 = vmul.f32 %v212, %v244
      %v249 = vmul.f32 %v213, %v244
      %v250 = vmul.f32 %v214, %v244
      %v251 = vmul.f32 %v215, %v244
      %v252 = vmul.f32 %v216, %v244
      %v253 = vmul.f32 %v217, %v244
      %v254 = vmul.f32 %v218, %v244
      %v255 = vmul.f32 %v219, %v244
      %v256 = vmul.f32 %v220, %v244
      %v257 = vmul.f32 %v221, %v244
      %v258 = vmul.f32 %v222, %v244
      %v259 = vmul.f32 %v223, %v244
      %v260 = vmul.f32 %v224, %v244
      %v261 = vmul.f32 %v225, %v244
      %v262 = vmul.f32 %v226, %v244
      %v263 = vmul.f32 %v227, %v244
      %v264 = vmul.f32 %v228, %v244
      %v265 = vmul.f32 %v229, %v244
      %v266 = vmul.f32 %v230, %v244
      %v267 = vmul.f32 %v231, %v244
      %v268 = vmul.f32 %v232, %v244
      %v269 = vmul.f32 %v233, %v244
      %v270 = vmul.f32 %v234, %v244
      %v271 = vmul.f32 %v235, %v244
      %v272 = vmul.f32 %v236, %v244
      %v273 = vmul.f32 %v237, %v244
      %v274 = vmul.f32 %v238, %v244
      %v275 = vmul.f32 %v239, %v244
      %v276 = vmul.f32 %v240, %v244
      %v277 = vmul.f32 %v241, %v244
      %v278 = vld [vmem:[%s2] sm:$0x1]
      %v280 = vperm.slane %v278, 0
      %v282 = vadd.f32 %v246, %v280
      %v283 = vadd.f32 %v247, %v280
      %v284 = vadd.f32 %v248, %v280
      %v285 = vadd.f32 %v249, %v280
      %v286 = vadd.f32 %v250, %v280
      %v287 = vadd.f32 %v251, %v280
      %v288 = vadd.f32 %v252, %v280
      %v289 = vadd.f32 %v253, %v280
      %v290 = vadd.f32 %v254, %v280
      %v291 = vadd.f32 %v255, %v280
      %v292 = vadd.f32 %v256, %v280
      %v293 = vadd.f32 %v257, %v280
      %v294 = vadd.f32 %v258, %v280
      %v295 = vadd.f32 %v259, %v280
      %v296 = vadd.f32 %v260, %v280
      %v297 = vadd.f32 %v261, %v280
      %v298 = vadd.f32 %v262, %v280
      %v299 = vadd.f32 %v263, %v280
      %v300 = vadd.f32 %v264, %v280
      %v301 = vadd.f32 %v265, %v280
      %v302 = vadd.f32 %v266, %v280
      %v303 = vadd.f32 %v267, %v280
      %v304 = vadd.f32 %v268, %v280
      %v305 = vadd.f32 %v269, %v280
      %v306 = vadd.f32 %v270, %v280
      %v307 = vadd.f32 %v271, %v280
      %v308 = vadd.f32 %v272, %v280
      %v309 = vadd.f32 %v273, %v280
      %v310 = vadd.f32 %v274, %v280
      %v311 = vadd.f32 %v275, %v280
      %v312 = vadd.f32 %v276, %v280
      %v313 = vadd.f32 %v277, %v280
      %v314 = vmax.f32 %v282, 0.0
      %v315 = vmax.f32 %v283, 0.0
      %v316 = vmax.f32 %v284, 0.0
      %v317 = vmax.f32 %v285, 0.0
      %v318 = vmax.f32 %v286, 0.0
      %v319 = vmax.f32 %v287, 0.0
      %v320 = vmax.f32 %v288, 0.0
      %v321 = vmax.f32 %v289, 0.0
      %v322 = vmax.f32 %v290, 0.0
      %v323 = vmax.f32 %v291, 0.0
      %v324 = vmax.f32 %v292, 0.0
      %v325 = vmax.f32 %v293, 0.0
      %v326 = vmax.f32 %v294, 0.0
      %v327 = vmax.f32 %v295, 0.0
      %v328 = vmax.f32 %v296, 0.0
      %v329 = vmax.f32 %v297, 0.0
      %v330 = vmax.f32 %v298, 0.0
      %v331 = vmax.f32 %v299, 0.0
      %v332 = vmax.f32 %v300, 0.0
      %v333 = vmax.f32 %v301, 0.0
      %v334 = vmax.f32 %v302, 0.0
      %v335 = vmax.f32 %v303, 0.0
      %v336 = vmax.f32 %v304, 0.0
      %v337 = vmax.f32 %v305, 0.0
      %v338 = vmax.f32 %v306, 0.0
      %v339 = vmax.f32 %v307, 0.0
      %v340 = vmax.f32 %v308, 0.0
      %v341 = vmax.f32 %v309, 0.0
      %v342 = vmax.f32 %v310, 0.0
      %v343 = vmax.f32 %v311, 0.0
      %v344 = vmax.f32 %v312, 0.0
      %v345 = vmax.f32 %v313, 0.0
      %346 = vst [vmem:[%s208] sm:$0xff] %v314
      %347 = vst [vmem:[%s208 + $0x8] sm:$0xff] %v315
      %348 = vst [vmem:[%s208 + $0x10] sm:$0xff] %v316
      %349 = vst [vmem:[%s208 + $0x18] sm:$0xff] %v317
      %350 = vst [vmem:[%s208 + $0x20] sm:$0xff] %v318
      %351 = vst [vmem:[%s208 + $0x28] sm:$0xff] %v319
      %352 = vst [vmem:[%s208 + $0x30] sm:$0xff] %v320
      %353 = vst [vmem:[%s208 + $0x38] sm:$0xff] %v321
      %354 = vst [vmem:[%s208 + $0x40] sm:$0xff] %v322
      %355 = vst [vmem:[%s208 + $0x48] sm:$0xff] %v323
      %356 = vst [vmem:[%s208 + $0x50] sm:$0xff] %v324
      %357 = vst [vmem:[%s208 + $0x58] sm:$0xff] %v325
      %358 = vst [vmem:[%s208 + $0x60] sm:$0xff] %v326
      %359 = vst [vmem:[%s208 + $0x68] sm:$0xff] %v327
      %360 = vst [vmem:[%s208 + $0x70] sm:$0xff] %v328
      %361 = vst [vmem:[%s208 + $0x78] sm:$0xff] %v329
      %362 = vst [vmem:[%s208 + $0x80] sm:$0xff] %v330
      %363 = vst [vmem:[%s208 + $0x88] sm:$0xff] %v331
      %364 = vst [vmem:[%s208 + $0x90] sm:$0xff] %v332
      %365 = vst [vmem:[%s208 + $0x98] sm:$0xff] %v333
      %366 = vst [vmem:[%s208 + $0xa0] sm:$0xff] %v334
      %367 = vst [vmem:[%s208 + $0xa8] sm:$0xff] %v335
      %368 = vst [vmem:[%s208 + $0xb0] sm:$0xff] %v336
      %369 = vst [vmem:[%s208 + $0xb8] sm:$0xff] %v337
      %370 = vst [vmem:[%s208 + $0xc0] sm:$0xff] %v338
      %371 = vst [vmem:[%s208 + $0xc8] sm:$0xff] %v339
      %372 = vst [vmem:[%s208 + $0xd0] sm:$0xff] %v340
      %373 = vst [vmem:[%s208 + $0xd8] sm:$0xff] %v341
      %374 = vst [vmem:[%s208 + $0xe0] sm:$0xff] %v342
      %375 = vst [vmem:[%s208 + $0xe8] sm:$0xff] %v343
      %376 = vst [vmem:[%s208 + $0xf0] sm:$0xff] %v344
      %377 = vst [vmem:[%s208 + $0xf8] sm:$0xff] %v345
      %s378 = smul.u32 32, %s19
      %p379 = scmp.lt.s32.totalorder %s18, 3
      %s380 = scalar_select %p379, %s18, 3
      %p381 = scmp.lt.s32.totalorder %s378, 63
      %s382 = scalar_select %p381, %s378, 63
      %s383 = smul.addr %s380, 64
      %s384 = sadd.s32 %s382, %s383
      %s385 = smul.addr %s384, 8
      %s386 = scalar_lea.vmem %s3, %s385
      // Predicated region
      $region33: #{deconv_block_forward.3} parent=31 // pred_check
        %p387 = pneg %p116
      $region34: #{deconv_block_forward.3} parent=31 // pred_check_branch
        %389 = sbr.rel (%p387) target = $region36
      $region35: #{deconv_block_forward.3} parent=31 // pred_region
        %s390 = smul.u32 32, %s19
      $region36: #{deconv_block_forward.3} parent=31 // pred_fallthru
        _
    $region32: #{deconv_block_forward.3} parent=5 // pred_fallthru
      _
    %p391 = scmp.le.s32.totalorder 2, %s9
    // Predicated region
    $region37: #{deconv_block_forward.3} parent=5 // pred_check
      %p392 = pneg %p391
    $region38: #{deconv_block_forward.3} parent=5 // pred_check_branch
      %394 = sbr.rel (%p392) target = $region40
    $region39: #{deconv_block_forward.3} parent=5 // pred_region
      %s395 = ssub.s32 %s9, 2
      // Predicated region
      $region41: #{deconv_block_forward.3} parent=39 // pred_check
        %p396 = pneg %p122
      $region42: #{deconv_block_forward.3} parent=39 // pred_check_branch
        %398 = sbr.rel (%p396) target = $region44
      $region43: #{deconv_block_forward.3} parent=39 // pred_region
        %s399 = smul.u32 32, %s21
        %p400 = scmp.lt.s32.totalorder %s20, 3
        %s401 = scalar_select %p400, %s20, 3
        %p402 = scmp.lt.s32.totalorder %s399, 63
        %s403 = scalar_select %p402, %s399, 63
        %s404 = smul.addr %s401, 64
        %s405 = sadd.s32 %s403, %s404
        %s406 = smul.addr %s405, 8
        %s407 = scalar_lea.vmem %s3, %s406
      $region44: #{deconv_block_forward.3} parent=39 // pred_fallthru
        _
    $region40: #{deconv_block_forward.3} parent=5 // pred_fallthru
      _
  $region6: #{deconv_block_forward.3} parent=0 // loop_footer
    %s13 = sadd.s32 1, %s9
  $region7: #{deconv_block_forward.3} parent=0 // loop_footer_branch
    %8 = sbr.rel target = $region3
  $region8: #{deconv_block_forward.3} parent=0 // loop_exit
    _

// kernel: deconv_block_forward.2
$region0: #{deconv_block_forward.2}
  #allocation0 [shape = 'u32[]', space=smem, size = 0x4, offset = 0x4, fixed_abs, tag = 'smem constant byte address 0x4 - core index']
  #allocation1 [shape = 'u32[72,128]{1,0:T(1,128)}', space=vmem, size = 0x9000, scoped, tag = 'internal scratch']
  %s0 = inlined_call_operand.vmem [shape: bf16[4,512,16], index: 0, kind: input, shape index: {}]
  %s1 = inlined_call_operand.vmem [shape: bf16[4,16,128], index: 1, kind: input, shape index: {}]
  %s2 = inlined_call_operand.vmem [shape: f32[4,512,128], index: 2, kind: output, shape index: {0}]
  %s3 = inlined_call_operand.vmem [shape: f32[4,2,8,128], index: 3, kind: output, shape index: {1}]
  %4 = xla_tuple %s2, %s3
  %s5 = sld [smem:[#allocation0]]
  $region49: #{deconv_block_forward.2} parent=0
    _
  %s7 = ssub.s32 1, %s5
  %s8 = scalar_select 0, %s7, %s5
  loop: start=0, step=1, limit=10
  $region2: #{deconv_block_forward.2} parent=0 // loop_pre_header
    _
  $region3: #{deconv_block_forward.2} parent=0 // loop_header
    %s10 = sphi 0, %s14
    %p11 = scmp.ge.s32.totalorder %s10, 10
    %s17 = sphi 0, %s29
    %s18 = sphi 0, %s25
    %s19 = sphi 0, %s17
    %s20 = sphi 0, %s18
    %s21 = sphi 0, %s19
    %s22 = sphi 0, %s20
    %s34 = sphi 0, %s36
    %s37 = sphi 0, %s34
    %s38 = sphi 0, %s37
    %s54 = sphi 0, %s38
    %s60 = sphi 0, %s62
    %s63 = sphi 0, %s60
    %s64 = sphi 0, %s63
    %s80 = sphi 0, %s64
    %s88 = sphi 0, %s90
    %s91 = sphi 0, %s88
    %s92 = sphi 0, %s91
    %s108 = sphi 0, %s92
    %s116 = sphi 0, %s118
    %s119 = sphi 0, %s116
    %s120 = sphi 0, %s119
    %s136 = sphi 0, %s120
  $region4: #{deconv_block_forward.2} parent=0 // loop_header_branch
    %13 = sbr.rel (%p11) target = $region8
  $region5: #{deconv_block_forward.2} parent=0 // loop_body
    %s15 = ssub.s32 %s10, 1
    %s16 = ssub.s32 %s10, 2
    %s23 = sadd.s32 1, %s18
    %p24 = scmp.ge.s32.totalorder %s23, 2
    %s25 = scalar_select %p24, 0, %s23
    %s26 = sadd.s32 1, %s17
    %s27 = scalar_select %p24, %s26, %s17
    %p28 = scmp.ge.s32.totalorder %s27, 4
    %s29 = scalar_select %p28, 0, %s27
    %s30 = ssub.s32 %s17, %s29
    %s31 = ssub.s32 %s18, %s25
    %s32 = sor.u32 %s30, %s31
    %p33 = scmp.eq.s32.totalorder %s32, 0
    %s35 = sadd.s32 %s34, 1
    %s36 = scalar_select %p33, %s34, %s35
    %p39 = pneg %p33
    %p40 = scmp.eq.s32.totalorder %s10, 7
    %p41 = por %p39, %p40
    %p42 = scmp.ne.s32.totalorder %s34, %s37
    %p43 = scmp.eq.s32.totalorder %s10, 0
    %p44 = por %p42, %p43
    %p45 = scmp.ne.s32.totalorder %s34, %s37
    %p46 = scmp.eq.s32.totalorder %s15, 7
    %p47 = por %p45, %p46
    %p48 = scmp.ne.s32.totalorder %s37, %s38
    %p49 = scmp.eq.s32.totalorder %s15, 0
    %p50 = por %p48, %p49
    %p51 = scmp.ne.s32.totalorder %s37, %s38
    %p52 = scmp.eq.s32.totalorder %s16, 7
    %p53 = por %p51, %p52
    %p55 = scmp.ne.s32.totalorder %s38, %s54
    %p56 = scmp.eq.s32.totalorder %s16, 0
    %p57 = por %p55, %p56
    %s58 = ssub.s32 %s17, %s29
    %p59 = scmp.eq.s32.totalorder %s58, 0
    %s61 = sadd.s32 %s60, 1
    %s62 = scalar_select %p59, %s60, %s61
    %p65 = pneg %p59
    %p66 = scmp.eq.s32.totalorder %s10, 7
    %p67 = por %p65, %p66
    %p68 = scmp.ne.s32.totalorder %s60, %s63
    %p69 = scmp.eq.s32.totalorder %s10, 0
    %p70 = por %p68, %p69
    %p71 = scmp.ne.s32.totalorder %s60, %s63
    %p72 = scmp.eq.s32.totalorder %s15, 7
    %p73 = por %p71, %p72
    %p74 = scmp.ne.s32.totalorder %s63, %s64
    %p75 = scmp.eq.s32.totalorder %s15, 0
    %p76 = por %p74, %p75
    %p77 = scmp.ne.s32.totalorder %s63, %s64
    %p78 = scmp.eq.s32.totalorder %s16, 7
    %p79 = por %p77, %p78
    %p81 = scmp.ne.s32.totalorder %s64, %s80
    %p82 = scmp.eq.s32.totalorder %s16, 0
    %p83 = por %p81, %p82
    %s84 = ssub.s32 %s17, %s29
    %s85 = ssub.s32 %s18, %s25
    %s86 = sor.u32 %s84, %s85
    %p87 = scmp.eq.s32.totalorder %s86, 0
    %s89 = sadd.s32 %s88, 1
    %s90 = scalar_select %p87, %s88, %s89
    %p93 = pneg %p87
    %p94 = scmp.eq.s32.totalorder %s10, 7
    %p95 = por %p93, %p94
    %p96 = scmp.ne.s32.totalorder %s88, %s91
    %p97 = scmp.eq.s32.totalorder %s10, 0
    %p98 = por %p96, %p97
    %p99 = scmp.ne.s32.totalorder %s88, %s91
    %p100 = scmp.eq.s32.totalorder %s15, 7
    %p101 = por %p99, %p100
    %p102 = scmp.ne.s32.totalorder %s91, %s92
    %p103 = scmp.eq.s32.totalorder %s15, 0
    %p104 = por %p102, %p103
    %p105 = scmp.ne.s32.totalorder %s91, %s92
    %p106 = scmp.eq.s32.totalorder %s16, 7
    %p107 = por %p105, %p106
    %p109 = scmp.ne.s32.totalorder %s92, %s108
    %p110 = scmp.eq.s32.totalorder %s16, 0
    %p111 = por %p109, %p110
    %s112 = ssub.s32 %s17, %s29
    %s113 = ssub.s32 %s18, %s25
    %s114 = sor.u32 %s112, %s113
    %p115 = scmp.eq.s32.totalorder %s114, 0
    %s117 = sadd.s32 %s116, 1
    %s118 = scalar_select %p115, %s116, %s117
    %p121 = pneg %p115
    %p122 = scmp.eq.s32.totalorder %s10, 7
    %p123 = por %p121, %p122
    %p124 = scmp.ne.s32.totalorder %s116, %s119
    %p125 = scmp.eq.s32.totalorder %s10, 0
    %p126 = por %p124, %p125
    %p127 = scmp.ne.s32.totalorder %s116, %s119
    %p128 = scmp.eq.s32.totalorder %s15, 7
    %p129 = por %p127, %p128
    %p130 = scmp.ne.s32.totalorder %s119, %s120
    %p131 = scmp.eq.s32.totalorder %s15, 0
    %p132 = por %p130, %p131
    %p133 = scmp.ne.s32.totalorder %s119, %s120
    %p134 = scmp.eq.s32.totalorder %s16, 7
    %p135 = por %p133, %p134
    %p137 = scmp.ne.s32.totalorder %s120, %s136
    %p138 = scmp.eq.s32.totalorder %s16, 0
    %p139 = por %p137, %p138
    %p140 = scmp.le.s32.totalorder 1, %s10
    %p141 = scmp.lt.s32.totalorder %s10, 9
    %p142 = pnand %p140, %p141
    %p143 = pneg %p142
    // Predicated region
    $region9: #{deconv_block_forward.2} parent=5 // pred_check
      _
    $region10: #{deconv_block_forward.2} parent=5 // pred_check_branch
      %145 = sbr.rel (%p142) target = $region12
    $region11: #{deconv_block_forward.2} parent=5 // pred_region
      %s146 = ssub.s32 %s10, 1
    $region12: #{deconv_block_forward.2} parent=5 // pred_fallthru
      _
    %p147 = scmp.lt.s32.totalorder %s10, 8
    // Predicated region
    $region13: #{deconv_block_forward.2} parent=5 // pred_check
      %p148 = pneg %p147
    $region14: #{deconv_block_forward.2} parent=5 // pred_check_branch
      %150 = sbr.rel (%p148) target = $region16
    $region15: #{deconv_block_forward.2} parent=5 // pred_region
      // Predicated region
      $region17: #{deconv_block_forward.2} parent=15 // pred_check
        %p151 = pneg %p44
      $region18: #{deconv_block_forward.2} parent=15 // pred_check_branch
        %153 = sbr.rel (%p151) target = $region20
      $region19: #{deconv_block_forward.2} parent=15 // pred_region
        %s154 = smul.u32 32, %s18
        %p155 = scmp.lt.s32.totalorder %s17, 3
        %s156 = scalar_select %p155, %s17, 3
        %p157 = scmp.lt.s32.totalorder %s154, 63
        %s158 = scalar_select %p157, %s154, 63
        %s159 = smul.addr %s156, 64
        %s160 = sadd.s32 %s158, %s159
        %s161 = smul.addr %s160, 4
        %s162 = scalar_lea.vmem %s0, %s161
        %s163 = smul.u32 32, %s18
      $region20: #{deconv_block_forward.2} parent=15 // pred_fallthru
        _
      // Predicated region
      $region21: #{deconv_block_forward.2} parent=15 // pred_check
        %p164 = pneg %p70
      $region22: #{deconv_block_forward.2} parent=15 // pred_check_branch
        %166 = sbr.rel (%p164) target = $region24
      $region23: #{deconv_block_forward.2} parent=15 // pred_region
        %p167 = scmp.lt.s32.totalorder %s17, 3
        %s168 = scalar_select %p167, %s17, 3
        %s169 = smul.addr %s168, 2
        %s170 = smul.addr %s169, 4
        %s171 = scalar_lea.vmem %s1, %s170
      $region24: #{deconv_block_forward.2} parent=15 // pred_fallthru
        _
    $region16: #{deconv_block_forward.2} parent=5 // pred_fallthru
      _
    %p172 = scmp.le.s32.totalorder 1, %s10
    %p173 = scmp.lt.s32.totalorder %s10, 9
    %p174 = pnand %p172, %p173
    %p175 = pneg %p174
    // Predicated region
    $region25: #{deconv_block_forward.2} parent=5 // pred_check
      _
    $region26: #{deconv_block_forward.2} parent=5 // pred_check_branch
      %177 = sbr.rel (%p174) target = $region28
    $region27: #{deconv_block_forward.2} parent=5 // pred_region
      %s178 = ssub.s32 %s10, 1
      %s179 = smul.u32 32, %s20
      %p180 = scmp.lt.s32.totalorder %s19, 3
      %s181 = scalar_select %p180, %s19, 3
      %p182 = scmp.lt.s32.totalorder %s179, 63
      %s183 = scalar_select %p182, %s179, 63
      %s184 = smul.addr %s181, 64
      %s185 = sadd.s32 %s183, %s184
      %s186 = smul.addr %s185, 4
      %s187 = scalar_lea.vmem %s0, %s186
      %p188 = pneg %p50
      %p189 = pneg %p47
      %p190 = scmp.lt.s32.totalorder %s19, 3
      %s191 = scalar_select %p190, %s19, 3
      %s192 = smul.addr %s191, 2
      %s193 = smul.addr %s192, 4
      %s194 = scalar_lea.vmem %s1, %s193
      %p195 = pneg %p76
      %p196 = pneg %p73
      %p197 = pneg %p104
      %p198 = pneg %p101
      %s199 = smul.u32 32, %s20
      %p200 = scmp.lt.s32.totalorder %s19, 3
      %s201 = scalar_select %p200, %s19, 3
      %p202 = scmp.lt.s32.totalorder %s199, 63
      %s203 = scalar_select %p202, %s199, 63
      %s204 = smul.addr %s201, 64
      %s205 = sadd.s32 %s203, %s204
      %s206 = smul.addr %s205, 8
      %s207 = scalar_lea.vmem %s2, %s206
      %p208 = pneg %p132
      %p209 = pneg %p129
      %p210 = scmp.lt.s32.totalorder %s19, 3
      %s211 = scalar_select %p210, %s19, 3
      %p212 = scmp.lt.s32.totalorder %s20, 1
      %s213 = scalar_select %p212, %s20, 1
      %s214 = smul.addr %s211, 2
      %s215 = sadd.s32 %s213, %s214
      %s216 = smul.addr %s215, 8
      %s217 = scalar_lea.vmem %s3, %s216
      %s218 = smul.u32 32, %s20
      %p219 = scmp.lt.s32.totalorder %s19, 3
      %s220 = scalar_select %p219, %s19, 3
      %p221 = scmp.lt.s32.totalorder %s218, 63
      %s222 = scalar_select %p221, %s218, 63
      %s223 = smul.addr %s220, 64
      %s224 = sadd.s32 %s222, %s223
      %s225 = smul.addr %s224, 4
      %s226 = scalar_lea.vmem %s0, %s225
      %s227 = smul.u32 32, %s20
      %p228 = scmp.lt.s32.totalorder %s19, 3
      %s229 = scalar_select %p228, %s19, 3
      %s230 = smul.addr %s229, 2
      %s231 = smul.addr %s230, 4
      %s232 = scalar_lea.vmem %s1, %s231
      %s233 = smul.u32 32, %s20
      %p234 = scmp.lt.s32.totalorder %s19, 3
      %s235 = scalar_select %p234, %s19, 3
      %p236 = scmp.lt.s32.totalorder %s233, 63
      %s237 = scalar_select %p236, %s233, 63
      %s238 = smul.addr %s235, 64
      %s239 = sadd.s32 %s237, %s238
      %s240 = smul.addr %s239, 8
      %s241 = scalar_lea.vmem %s2, %s240
      %s242 = smul.u32 32, %s20
      %p243 = scmp.lt.s32.totalorder %s19, 3
      %s244 = scalar_select %p243, %s19, 3
      %p245 = scmp.lt.s32.totalorder %s20, 1
      %s246 = scalar_select %p245, %s20, 1
      %s247 = smul.addr %s244, 2
      %s248 = sadd.s32 %s246, %s247
      %s249 = smul.addr %s248, 8
      %s250 = scalar_lea.vmem %s3, %s249
      %v252 = vld [vmem:[%s226] sm:$0xf]
      %v253 = vld [vmem:[%s226 + $0x4] sm:$0xf]
      %v254 = vld [vmem:[%s226 + $0x8] sm:$0xf]
      %v255 = vld [vmem:[%s226 + $0xc] sm:$0xf]
      %v256 = vld [vmem:[%s226 + $0x10] sm:$0xf]
      %v257 = vld [vmem:[%s226 + $0x14] sm:$0xf]
      %v258 = vld [vmem:[%s226 + $0x18] sm:$0xf]
      %v259 = vld [vmem:[%s226 + $0x1c] sm:$0xf]
      %v260 = vld [vmem:[%s226 + $0x20] sm:$0xf]
      %v261 = vld [vmem:[%s226 + $0x24] sm:$0xf]
      %v262 = vld [vmem:[%s226 + $0x28] sm:$0xf]
      %v263 = vld [vmem:[%s226 + $0x2c] sm:$0xf]
      %v264 = vld [vmem:[%s226 + $0x30] sm:$0xf]
      %v265 = vld [vmem:[%s226 + $0x34] sm:$0xf]
      %v266 = vld [vmem:[%s226 + $0x38] sm:$0xf]
      %v267 = vld [vmem:[%s226 + $0x3c] sm:$0xf]
      %v268 = vld [vmem:[%s226 + $0x40] sm:$0xf]
      %v269 = vld [vmem:[%s226 + $0x44] sm:$0xf]
      %v270 = vld [vmem:[%s226 + $0x48] sm:$0xf]
      %v271 = vld [vmem:[%s226 + $0x4c] sm:$0xf]
      %v272 = vld [vmem:[%s226 + $0x50] sm:$0xf]
      %v273 = vld [vmem:[%s226 + $0x54] sm:$0xf]
      %v274 = vld [vmem:[%s226 + $0x58] sm:$0xf]
      %v275 = vld [vmem:[%s226 + $0x5c] sm:$0xf]
      %v276 = vld [vmem:[%s226 + $0x60] sm:$0xf]
      %v277 = vld [vmem:[%s226 + $0x64] sm:$0xf]
      %v278 = vld [vmem:[%s226 + $0x68] sm:$0xf]
      %v279 = vld [vmem:[%s226 + $0x6c] sm:$0xf]
      %v280 = vld [vmem:[%s226 + $0x70] sm:$0xf]
      %v281 = vld [vmem:[%s226 + $0x74] sm:$0xf]
      %v282 = vld [vmem:[%s226 + $0x78] sm:$0xf]
      %v283 = vld [vmem:[%s226 + $0x7c] sm:$0xf]
      %v284 = vld [vmem:[%s232] sm:$0xf]
      %v285 = vld [vmem:[%s232 + $0x4] sm:$0xf]
      %v318 = vunpack.c.l.b16 %v252
      %v319 = vunpack.c.l.b16 %v253
      %v320 = vunpack.c.l.b16 %v254
      %v321 = vunpack.c.l.b16 %v255
      %v322 = vunpack.c.l.b16 %v256
      %v323 = vunpack.c.l.b16 %v257
      %v324 = vunpack.c.l.b16 %v258
      %v325 = vunpack.c.l.b16 %v259
      %v326 = vunpack.c.l.b16 %v260
      %v327 = vunpack.c.l.b16 %v261
      %v328 = vunpack.c.l.b16 %v262
      %v329 = vunpack.c.l.b16 %v263
      %v330 = vunpack.c.l.b16 %v264
      %v331 = vunpack.c.l.b16 %v265
      %v332 = vunpack.c.l.b16 %v266
      %v333 = vunpack.c.l.b16 %v267
      %v334 = vunpack.c.l.b16 %v268
      %v335 = vunpack.c.l.b16 %v269
      %v336 = vunpack.c.l.b16 %v270
      %v337 = vunpack.c.l.b16 %v271
      %v338 = vunpack.c.l.b16 %v272
      %v339 = vunpack.c.l.b16 %v273
      %v340 = vunpack.c.l.b16 %v274
      %v341 = vunpack.c.l.b16 %v275
      %v342 = vunpack.c.l.b16 %v276
      %v343 = vunpack.c.l.b16 %v277
      %v344 = vunpack.c.l.b16 %v278
      %v345 = vunpack.c.l.b16 %v279
      %v346 = vunpack.c.l.b16 %v280
      %v347 = vunpack.c.l.b16 %v281
      %v348 = vunpack.c.l.b16 %v282
      %v349 = vunpack.c.l.b16 %v283
      %v350 = vpack.c.b16 %v319, %v318
      %v351 = vpack.c.b16 %v321, %v320
      %v352 = vpack.c.b16 %v323, %v322
      %v353 = vpack.c.b16 %v325, %v324
      %v354 = vpack.c.b16 %v327, %v326
      %v355 = vpack.c.b16 %v329, %v328
      %v356 = vpack.c.b16 %v331, %v330
      %v357 = vpack.c.b16 %v333, %v332
      %v358 = vpack.c.b16 %v335, %v334
      %v359 = vpack.c.b16 %v337, %v336
      %v360 = vpack.c.b16 %v339, %v338
      %v361 = vpack.c.b16 %v341, %v340
      %v362 = vpack.c.b16 %v343, %v342
      %v363 = vpack.c.b16 %v345, %v344
      %v364 = vpack.c.b16 %v347, %v346
      %v365 = vpack.c.b16 %v349, %v348
      %v368 = vunpack.c.l.b16 %v284
      %v369 = vunpack.c.l.b16 %v285
      %v370 = vpack.c.b16 %v369, %v368
      %vm372 = vcmask 130048
      %v374 = vsel %vm372, %v350, 0
      %v377 = vsel %vm372, %v351, 0
      %v380 = vsel %vm372, %v352, 0
      %v383 = vsel %vm372, %v353, 0
      %v386 = vsel %vm372, %v354, 0
      %v389 = vsel %vm372, %v355, 0
      %v392 = vsel %vm372, %v356, 0
      %v395 = vsel %vm372, %v357, 0
      %v398 = vsel %vm372, %v358, 0
      %v401 = vsel %vm372, %v359, 0
      %v404 = vsel %vm372, %v360, 0
      %v407 = vsel %vm372, %v361, 0
      %v410 = vsel %vm372, %v362, 0
      %v413 = vsel %vm372, %v363, 0
      %v416 = vsel %vm372, %v364, 0
      %v419 = vsel %vm372, %v365, 0
      %421 = vmatpush.bf16.msra.mxu0 0
      %422 = vmatpush.bf16.msra.mxu0 0
      %423 = vmatpush.bf16.msra.mxu0 0
      %424 = vmatpush.bf16.msra.mxu0 0
      %425 = vmatpush.bf16.msra.mxu0 0
      %426 = vmatpush.bf16.msra.mxu0 0
      %427 = vmatpush.bf16.msra.mxu0 0
      %428 = vmatpush.bf16.msra.mxu0 %v370
      %429 = vmatmul.bf16.gmra.mxu0 %v374
      %v430 = vpop.f32.mrf.mxu0
      %v431 = vadd.f32 0.0, %v430
      %v432 = vpop.f32.mrf.mxu0
      %v433 = vadd.f32 0.0, %v432
      %434 = vmatmul.bf16.gmra.mxu0 %v377
      %v435 = vpop.f32.mrf.mxu0
      %v436 = vadd.f32 0.0, %v435
      %v437 = vpop.f32.mrf.mxu0
      %v438 = vadd.f32 0.0, %v437
      %439 = vmatmul.bf16.gmra.mxu0 %v380
      %v440 = vpop.f32.mrf.mxu0
      %v441 = vadd.f32 0.0, %v440
      %v442 = vpop.f32.mrf.mxu0
      %v443 = vadd.f32 0.0, %v442
      %444 = vmatmul.bf16.gmra.mxu0 %v383
      %v445 = vpop.f32.mrf.mxu0
      %v446 = vadd.f32 0.0, %v445
      %v447 = vpop.f32.mrf.mxu0
      %v448 = vadd.f32 0.0, %v447
      %449 = vmatmul.bf16.gmra.mxu0 %v386
      %v450 = vpop.f32.mrf.mxu0
      %v451 = vadd.f32 0.0, %v450
      %v452 = vpop.f32.mrf.mxu0
      %v453 = vadd.f32 0.0, %v452
      %454 = vmatmul.bf16.gmra.mxu0 %v389
      %v455 = vpop.f32.mrf.mxu0
      %v456 = vadd.f32 0.0, %v455
      %v457 = vpop.f32.mrf.mxu0
      %v458 = vadd.f32 0.0, %v457
      %459 = vmatmul.bf16.gmra.mxu0 %v392
      %v460 = vpop.f32.mrf.mxu0
      %v461 = vadd.f32 0.0, %v460
      %v462 = vpop.f32.mrf.mxu0
      %v463 = vadd.f32 0.0, %v462
      %464 = vmatmul.bf16.gmra.mxu0 %v395
      %v465 = vpop.f32.mrf.mxu0
      %v466 = vadd.f32 0.0, %v465
      %v467 = vpop.f32.mrf.mxu0
      %v468 = vadd.f32 0.0, %v467
      %469 = vmatmul.bf16.gmra.mxu0 %v398
      %v470 = vpop.f32.mrf.mxu0
      %v471 = vadd.f32 0.0, %v470
      %v472 = vpop.f32.mrf.mxu0
      %v473 = vadd.f32 0.0, %v472
      %474 = vmatmul.bf16.gmra.mxu0 %v401
      %v475 = vpop.f32.mrf.mxu0
      %v476 = vadd.f32 0.0, %v475
      %v477 = vpop.f32.mrf.mxu0
      %v478 = vadd.f32 0.0, %v477
      %479 = vmatmul.bf16.gmra.mxu0 %v404
      %v480 = vpop.f32.mrf.mxu0
      %v481 = vadd.f32 0.0, %v480
      %v482 = vpop.f32.mrf.mxu0
      %v483 = vadd.f32 0.0, %v482
      %484 = vmatmul.bf16.gmra.mxu0 %v407
      %v485 = vpop.f32.mrf.mxu0
      %v486 = vadd.f32 0.0, %v485
      %v487 = vpop.f32.mrf.mxu0
      %v488 = vadd.f32 0.0, %v487
      %489 = vmatmul.bf16.gmra.mxu0 %v410
      %v490 = vpop.f32.mrf.mxu0
      %v491 = vadd.f32 0.0, %v490
      %v492 = vpop.f32.mrf.mxu0
      %v493 = vadd.f32 0.0, %v492
      %494 = vmatmul.bf16.gmra.mxu0 %v413
      %v495 = vpop.f32.mrf.mxu0
      %v496 = vadd.f32 0.0, %v495
      %v497 = vpop.f32.mrf.mxu0
      %v498 = vadd.f32 0.0, %v497
      %499 = vmatmul.bf16.gmra.mxu0 %v416
      %v500 = vpop.f32.mrf.mxu0
      %v501 = vadd.f32 0.0, %v500
      %v502 = vpop.f32.mrf.mxu0
      %v503 = vadd.f32 0.0, %v502
      %504 = vmatmul.bf16.gmra.mxu0 %v419
      %v505 = vpop.f32.mrf.mxu0
      %v506 = vadd.f32 0.0, %v505
      %v507 = vpop.f32.mrf.mxu0
      %v508 = vadd.f32 0.0, %v507
      %509 = vdwg.mxu0
      %510 = vst [vmem:[%s241] sm:$0xff] %v431
      %511 = vst [vmem:[%s241 + $0x8] sm:$0xff] %v433
      %512 = vst [vmem:[%s241 + $0x10] sm:$0xff] %v436
      %513 = vst [vmem:[%s241 + $0x18] sm:$0xff] %v438
      %514 = vst [vmem:[%s241 + $0x20] sm:$0xff] %v441
      %515 = vst [vmem:[%s241 + $0x28] sm:$0xff] %v443
      %516 = vst [vmem:[%s241 + $0x30] sm:$0xff] %v446
      %517 = vst [vmem:[%s241 + $0x38] sm:$0xff] %v448
      %518 = vst [vmem:[%s241 + $0x40] sm:$0xff] %v451
      %519 = vst [vmem:[%s241 + $0x48] sm:$0xff] %v453
      %520 = vst [vmem:[%s241 + $0x50] sm:$0xff] %v456
      %521 = vst [vmem:[%s241 + $0x58] sm:$0xff] %v458
      %522 = vst [vmem:[%s241 + $0x60] sm:$0xff] %v461
      %523 = vst [vmem:[%s241 + $0x68] sm:$0xff] %v463
      %524 = vst [vmem:[%s241 + $0x70] sm:$0xff] %v466
      %525 = vst [vmem:[%s241 + $0x78] sm:$0xff] %v468
      %526 = vst [vmem:[%s241 + $0x80] sm:$0xff] %v471
      %527 = vst [vmem:[%s241 + $0x88] sm:$0xff] %v473
      %528 = vst [vmem:[%s241 + $0x90] sm:$0xff] %v476
      %529 = vst [vmem:[%s241 + $0x98] sm:$0xff] %v478
      %530 = vst [vmem:[%s241 + $0xa0] sm:$0xff] %v481
      %531 = vst [vmem:[%s241 + $0xa8] sm:$0xff] %v483
      %532 = vst [vmem:[%s241 + $0xb0] sm:$0xff] %v486
      %533 = vst [vmem:[%s241 + $0xb8] sm:$0xff] %v488
      %534 = vst [vmem:[%s241 + $0xc0] sm:$0xff] %v491
      %535 = vst [vmem:[%s241 + $0xc8] sm:$0xff] %v493
      %536 = vst [vmem:[%s241 + $0xd0] sm:$0xff] %v496
      %537 = vst [vmem:[%s241 + $0xd8] sm:$0xff] %v498
      %538 = vst [vmem:[%s241 + $0xe0] sm:$0xff] %v501
      %539 = vst [vmem:[%s241 + $0xe8] sm:$0xff] %v503
      %540 = vst [vmem:[%s241 + $0xf0] sm:$0xff] %v506
      %541 = vst [vmem:[%s241 + $0xf8] sm:$0xff] %v508
      %542 = vst [vmem:[%s250] sm:$0xff] 0.0
      %v543 = vadd.f32 %v431, %v433
      %v544 = vadd.f32 %v543, %v436
      %v545 = vadd.f32 %v544, %v438
      %v546 = vadd.f32 %v545, %v441
      %v547 = vadd.f32 %v546, %v443
      %v548 = vadd.f32 %v547, %v446
      %v549 = vadd.f32 %v548, %v448
      %v550 = vadd.f32 %v549, %v451
      %v551 = vadd.f32 %v550, %v453
      %v552 = vadd.f32 %v551, %v456
      %v553 = vadd.f32 %v552, %v458
      %v554 = vadd.f32 %v553, %v461
      %v555 = vadd.f32 %v554, %v463
      %v556 = vadd.f32 %v555, %v466
      %v557 = vadd.f32 %v556, %v468
      %v558 = vadd.f32 %v557, %v471
      %v559 = vadd.f32 %v558, %v473
      %v560 = vadd.f32 %v559, %v476
      %v561 = vadd.f32 %v560, %v478
      %v562 = vadd.f32 %v561, %v481
      %v563 = vadd.f32 %v562, %v483
      %v564 = vadd.f32 %v563, %v486
      %v565 = vadd.f32 %v564, %v488
      %v566 = vadd.f32 %v565, %v491
      %v567 = vadd.f32 %v566, %v493
      %v568 = vadd.f32 %v567, %v496
      %v569 = vadd.f32 %v568, %v498
      %v570 = vadd.f32 %v569, %v501
      %v571 = vadd.f32 %v570, %v503
      %v572 = vadd.f32 %v571, %v506
      %v573 = vadd.f32 %v572, %v508
      %v574 = vrot.slane %v573, 4
      %v575 = vadd.f32 %v573, %v574
      %v576 = vrot.slane %v575, 2
      %v577 = vadd.f32 %v575, %v576
      %v578 = vrot.slane %v577, 1
      %v579 = vadd.f32 %v577, %v578
      %580 = vst [vmem:[%s250] sm:$0x1] %v579
      %v581 = vmul.f32 %v431, %v431
      %v582 = vmul.f32 %v433, %v433
      %v583 = vmul.f32 %v436, %v436
      %v584 = vmul.f32 %v438, %v438
      %v585 = vmul.f32 %v441, %v441
      %v586 = vmul.f32 %v443, %v443
      %v587 = vmul.f32 %v446, %v446
      %v588 = vmul.f32 %v448, %v448
      %v589 = vmul.f32 %v451, %v451
      %v590 = vmul.f32 %v453, %v453
      %v591 = vmul.f32 %v456, %v456
      %v592 = vmul.f32 %v458, %v458
      %v593 = vmul.f32 %v461, %v461
      %v594 = vmul.f32 %v463, %v463
      %v595 = vmul.f32 %v466, %v466
      %v596 = vmul.f32 %v468, %v468
      %v597 = vmul.f32 %v471, %v471
      %v598 = vmul.f32 %v473, %v473
      %v599 = vmul.f32 %v476, %v476
      %v600 = vmul.f32 %v478, %v478
      %v601 = vmul.f32 %v481, %v481
      %v602 = vmul.f32 %v483, %v483
      %v603 = vmul.f32 %v486, %v486
      %v604 = vmul.f32 %v488, %v488
      %v605 = vmul.f32 %v491, %v491
      %v606 = vmul.f32 %v493, %v493
      %v607 = vmul.f32 %v496, %v496
      %v608 = vmul.f32 %v498, %v498
      %v609 = vmul.f32 %v501, %v501
      %v610 = vmul.f32 %v503, %v503
      %v611 = vmul.f32 %v506, %v506
      %v612 = vmul.f32 %v508, %v508
      %v613 = vadd.f32 %v581, %v582
      %v614 = vadd.f32 %v613, %v583
      %v615 = vadd.f32 %v614, %v584
      %v616 = vadd.f32 %v615, %v585
      %v617 = vadd.f32 %v616, %v586
      %v618 = vadd.f32 %v617, %v587
      %v619 = vadd.f32 %v618, %v588
      %v620 = vadd.f32 %v619, %v589
      %v621 = vadd.f32 %v620, %v590
      %v622 = vadd.f32 %v621, %v591
      %v623 = vadd.f32 %v622, %v592
      %v624 = vadd.f32 %v623, %v593
      %v625 = vadd.f32 %v624, %v594
      %v626 = vadd.f32 %v625, %v595
      %v627 = vadd.f32 %v626, %v596
      %v628 = vadd.f32 %v627, %v597
      %v629 = vadd.f32 %v628, %v598
      %v630 = vadd.f32 %v629, %v599
      %v631 = vadd.f32 %v630, %v600
      %v632 = vadd.f32 %v631, %v601
      %v633 = vadd.f32 %v632, %v602
      %v634 = vadd.f32 %v633, %v603
      %v635 = vadd.f32 %v634, %v604
      %v636 = vadd.f32 %v635, %v605
      %v637 = vadd.f32 %v636, %v606
      %v638 = vadd.f32 %v637, %v607
      %v639 = vadd.f32 %v638, %v608
      %v640 = vadd.f32 %v639, %v609
      %v641 = vadd.f32 %v640, %v610
      %v642 = vadd.f32 %v641, %v611
      %v643 = vadd.f32 %v642, %v612
      %v644 = vrot.slane %v643, 4
      %v645 = vadd.f32 %v643, %v644
      %v646 = vrot.slane %v645, 2
      %v647 = vadd.f32 %v645, %v646
      %v648 = vrot.slane %v647, 1
      %v649 = vadd.f32 %v647, %v648
      %650 = vst [vmem:[%s250 + $0x1] sm:$0x1] %v649
      %s651 = smul.u32 32, %s20
      %p652 = scmp.lt.s32.totalorder %s19, 3
      %s653 = scalar_select %p652, %s19, 3
      %p654 = scmp.lt.s32.totalorder %s651, 63
      %s655 = scalar_select %p654, %s651, 63
      %s656 = smul.addr %s653, 64
      %s657 = sadd.s32 %s655, %s656
      %s658 = smul.addr %s657, 8
      %s659 = scalar_lea.vmem %s2, %s658
      %p660 = scmp.lt.s32.totalorder %s19, 3
      %s661 = scalar_select %p660, %s19, 3
      %p662 = scmp.lt.s32.totalorder %s20, 1
      %s663 = scalar_select %p662, %s20, 1
      %s664 = smul.addr %s661, 2
      %s665 = sadd.s32 %s663, %s664
      %s666 = smul.addr %s665, 8
      %s667 = scalar_lea.vmem %s3, %s666
      // Predicated region
      $region29: #{deconv_block_forward.2} parent=27 // pred_check
        %p668 = pneg %p101
      $region30: #{deconv_block_forward.2} parent=27 // pred_check_branch
        %670 = sbr.rel (%p668) target = $region32
      $region31: #{deconv_block_forward.2} parent=27 // pred_region
        %s671 = smul.u32 32, %s20
      $region32: #{deconv_block_forward.2} parent=27 // pred_fallthru
        _
      // Predicated region
      $region33: #{deconv_block_forward.2} parent=27 // pred_check
        %p672 = pneg %p129
      $region34: #{deconv_block_forward.2} parent=27 // pred_check_branch
        %674 = sbr.rel (%p672) target = $region36
      $region35: #{deconv_block_forward.2} parent=27 // pred_region
        _
      $region36: #{deconv_block_forward.2} parent=27 // pred_fallthru
        _
    $region28: #{deconv_block_forward.2} parent=5 // pred_fallthru
      _
    %p675 = scmp.le.s32.totalorder 2, %s10
    // Predicated region
    $region37: #{deconv_block_forward.2} parent=5 // pred_check
      %p676 = pneg %p675
    $region38: #{deconv_block_forward.2} parent=5 // pred_check_branch
      %678 = sbr.rel (%p676) target = $region40
    $region39: #{deconv_block_forward.2} parent=5 // pred_region
      %s679 = ssub.s32 %s10, 2
      // Predicated region
      $region41: #{deconv_block_forward.2} parent=39 // pred_check
        %p680 = pneg %p107
      $region42: #{deconv_block_forward.2} parent=39 // pred_check_branch
        %682 = sbr.rel (%p680) target = $region44
      $region43: #{deconv_block_forward.2} parent=39 // pred_region
        %s683 = smul.u32 32, %s22
        %p684 = scmp.lt.s32.totalorder %s21, 3
        %s685 = scalar_select %p684, %s21, 3
        %p686 = scmp.lt.s32.totalorder %s683, 63
        %s687 = scalar_select %p686, %s683, 63
        %s688 = smul.addr %s685, 64
        %s689 = sadd.s32 %s687, %s688
        %s690 = smul.addr %s689, 8
        %s691 = scalar_lea.vmem %s2, %s690
      $region44: #{deconv_block_forward.2} parent=39 // pred_fallthru
        _
      // Predicated region
      $region45: #{deconv_block_forward.2} parent=39 // pred_check
        %p692 = pneg %p135
      $region46: #{deconv_block_forward.2} parent=39 // pred_check_branch
        %694 = sbr.rel (%p692) target = $region48
      $region47: #{deconv_block_forward.2} parent=39 // pred_region
        %p695 = scmp.lt.s32.totalorder %s21, 3
        %s696 = scalar_select %p695, %s21, 3
        %p697 = scmp.lt.s32.totalorder %s22, 1
        %s698 = scalar_select %p697, %s22, 1
        %s699 = smul.addr %s696, 2
        %s700 = sadd.s32 %s698, %s699
        %s701 = smul.addr %s700, 8
        %s702 = scalar_lea.vmem %s3, %s701
      $region48: #{deconv_block_forward.2} parent=39 // pred_fallthru
        _
    $region40: #{deconv_block_forward.2} parent=5 // pred_fallthru
      _
  $region6: #{deconv_block_forward.2} parent=0 // loop_footer
    %s14 = sadd.s32 1, %s10
  $region7: #{deconv_block_forward.2} parent=0 // loop_footer_branch
    %9 = sbr.rel target = $region3
  $region8: #{deconv_block_forward.2} parent=0 // loop_exit
    _

</llo_original>
